<compile_context>
chip_gen: v5e
topology: v5e:2x2
jax: 0.10.0
libtpu: 0.0.40
codegen_flags: <defaults>
</compile_context>

<pallas_src>
import functools

import jax
import jax.numpy as jnp
from jax import lax
from jax.experimental import pallas as pl
from jax.experimental.pallas import tpu as pltpu

_LANE = 128
_ROW_ALIGN = 16            # rows padded to a multiple of 16 -> valid tile for f32 & bf16
_MAX_BLOCK_ROWS = 8192     # 8192 x 128 x 4B = 4 MiB per f32 input block
_PAD_LOGIT = -1.0e4        # finite sentinel: exp(-1e4) underflows to 0 -> loss contribution 0


def _num_splits():
    """2 parallel splits only on 2-TensorCore chips (v7x); 1 elsewhere."""
    try:
        kind = jax.devices()[0].device_kind.lower()
    except Exception:
        return 1
    return 2 if "v7" in kind else 1


def _bce_kernel(pw_ref, x_ref, t_ref, o_ref, *,
                num_blocks, steps_per_split, ragged_rows):
    c = pl.program_id(0)        # parallel split (separate TensorCore on v7x)
    i = pl.program_id(1)        # sequential reduction steps within the split

    @pl.when(i == 0)
    def _():
        o_ref[...] = jnp.zeros_like(o_ref)

    block_linear = c * steps_per_split + i

    # Skip clamp-duplicated blocks (only possible when the split axis is 2 and
    # num_blocks is odd). Everything else takes the fast path below.
    @pl.when(block_linear < num_blocks)
    def _():
        x = x_ref[...].astype(jnp.float32)
        t = t_ref[...].astype(jnp.float32)
        pw = pw_ref[0]              # scalar pos_weight from SMEM

        # Numerically stable softplus pieces (shared log term):
        #   softplus(-x) = -log(sigmoid(x)),  softplus(x) = -log(1 - sigmoid(x))
        log_term = jnp.log(1.0 + jnp.exp(-jnp.abs(x)))   # exactly 2 EUP pushes per vreg
        softplus_neg_x = jnp.maximum(-x, 0.0) + log_term
        softplus_pos_x = jnp.maximum(x, 0.0) + log_term
        loss = pw * t * softplus_neg_x + (1.0 - t) * softplus_pos_x

        if ragged_rows == 0:
            # Common case: rows divide evenly into blocks - no masking anywhere.
            o_ref[...] += jnp.sum(loss, axis=0, keepdims=True)
        else:
            # Only the final block reads past the array's last row (stale VMEM);
            # mask it with a row iota. Interior blocks stay unmasked.
            is_last = block_linear == num_blocks - 1

            @pl.when(is_last)
            def _():
                row = lax.broadcasted_iota(jnp.int32, loss.shape, 0)
                masked = jnp.where(row < ragged_rows, loss, 0.0)
                o_ref[...] += jnp.sum(masked, axis=0, keepdims=True)

            @pl.when(jnp.logical_not(is_last))
            def _():
                o_ref[...] += jnp.sum(loss, axis=0, keepdims=True)


def bce_with_logits_loss(logits, targets, pos_weight=1.0):
    """Mean-reduced BCEWithLogitsLoss with scalar pos_weight (torch semantics)."""
    assert logits.shape == targets.shape
    n = int(logits.size)
    assert n > 0

    tile = _ROW_ALIGN * _LANE
    n_pad = -(-n // tile) * tile
    pad = n_pad - n

    x = logits.reshape(-1)
    t = targets.reshape(-1)
    if pad:
        # Sentinel padding: padded elements contribute exactly 0 to the sum, so
        # no per-element mask is needed in the kernel. (One extra HBM copy for
        # unaligned shapes only; aligned NCHW maps skip this entirely.)
        x = jnp.pad(x, (0, pad), constant_values=_PAD_LOGIT)
        t = jnp.pad(t, (0, pad), constant_values=0.0)

    rows = n_pad // _LANE
    x = x.reshape(rows, _LANE)
    t = t.reshape(rows, _LANE)

    block_rows = min(_MAX_BLOCK_ROWS, rows)
    num_blocks = -(-rows // block_rows)
    ragged_rows = rows % block_rows          # valid rows in final block (0 = even split)

    num_splits = _num_splits()
    steps_per_split = -(-num_blocks // num_splits)
    grid = (num_splits, steps_per_split)

    def data_map(c, i):
        # Clamp so the DMA never reads past the array; duplicated blocks are
        # skipped inside the kernel via a scalar pl.when.
        return (jnp.minimum(c * steps_per_split + i, num_blocks - 1), 0)

    data_spec = pl.BlockSpec((block_rows, _LANE), data_map)

    kernel = functools.partial(
        _bce_kernel,
        num_blocks=num_blocks,
        steps_per_split=steps_per_split,
        ragged_rows=ragged_rows,
    )

    pw = jnp.asarray([pos_weight], dtype=jnp.float32)

    partials = pl.pallas_call(
        kernel,
        out_shape=jax.ShapeDtypeStruct((num_splits, _LANE), jnp.float32),
        grid_spec=pltpu.PrefetchScalarGridSpec(
            num_scalar_prefetch=0,
            grid=grid,
            in_specs=[
                pl.BlockSpec(memory_space=pltpu.MemorySpace.SMEM),  # pos_weight
                data_spec,                                          # logits
                data_spec,                                          # targets
            ],
            out_specs=pl.BlockSpec((1, _LANE), lambda c, i: (c, 0)),
        ),
        compiler_params=pltpu.CompilerParams(
            dimension_semantics=(
                pltpu.CORE_PARALLEL if num_splits > 1 else pltpu.ARBITRARY,
                pltpu.ARBITRARY,
            ),
            vmem_limit_bytes=32 * 1024 * 1024,
        ),
    )(pw, x, t)

    # Tiny final cross-lane reduce over (num_splits, 128) partials + mean.
    return jnp.sum(partials) / n


def _reference(logits, targets, pos_weight):
    x = logits.astype(jnp.float32)
    t = targets.astype(jnp.float32)
    log_sig = jax.nn.log_sigmoid(x)
    log_one_minus_sig = jax.nn.log_sigmoid(-x)
    loss = -(pos_weight * t * log_sig + (1.0 - t) * log_one_minus_sig)
    return jnp.mean(loss)


if __name__ == "__main__":
    key = jax.random.PRNGKey(0)
    k1, k2 = jax.random.split(key)

    # Small NCHW-shaped inputs, as a segmentation-style loss would see.
    shape = (2, 4, 16, 16)
    logits = jax.random.normal(k1, shape, dtype=jnp.float32) * 2.0
    targets = (jax.random.uniform(k2, shape) > 0.5).astype(jnp.float32)

    pos_weight = 2.0  # config_loss.get('pos_weight', 1.0)

    out = bce_with_logits_loss(logits, targets, pos_weight=pos_weight)
    out = jax.block_until_ready(out)
    ref = _reference(logits, targets, pos_weight)
    assert jnp.allclose(out, ref, rtol=1e-5, atol=1e-5), (out, ref)

    # Unaligned element count exercises the sentinel-padding path.
    k3, k4 = jax.random.split(k1)
    shape2 = (3, 5, 7)
    logits2 = jax.random.normal(k3, shape2, dtype=jnp.float32) * 3.0
    targets2 = (jax.random.uniform(k4, shape2) > 0.5).astype(jnp.float32)
    out2 = jax.block_until_ready(bce_with_logits_loss(logits2, targets2, pos_weight=0.5))
    ref2 = _reference(logits2, targets2, 0.5)
    assert jnp.allclose(out2, ref2, rtol=1e-5, atol=1e-5), (out2, ref2)

    print("KERNEL_OK")
</pallas_src>

<mosaic_0001>
module attributes {stable_mosaic.version = 11 : i64} {
  func.func @_bce_kernel(%arg0: i32, %arg1: i32, %arg2: memref<1xf32, #tpu.memory_space<smem>>, %arg3: memref<16x128xf32, #tpu.memory_space<vmem>>, %arg4: memref<16x128xf32, #tpu.memory_space<vmem>>, %arg5: memref<1x128xf32, #tpu.memory_space<vmem>>) attributes {dimension_semantics = [#tpu.dimension_semantics<arbitrary>, #tpu.dimension_semantics<arbitrary>], iteration_bounds = array<i64: 1, 1>, scalar_prefetch = 0 : i64, scratch_operands = 0 : i64, tpu.core_type = #tpu.core_type<tc>, window_params = [{transform_indices = @transform_0, window_bounds = array<i64: 1>}, {transform_indices = @transform_1, window_bounds = array<i64: 16, 128>}, {transform_indices = @transform_2, window_bounds = array<i64: 16, 128>}, {transform_indices = @transform_3, window_bounds = array<i64: 1, 128>}]} {
    %c0_i32 = arith.constant 0 : i32
    %0 = arith.cmpi eq, %arg1, %c0_i32 : i32
    %1 = arith.extui %0 : i1 to i32
    %c0_i32_0 = arith.constant 0 : i32
    %2 = arith.cmpi ne, %1, %c0_i32_0 : i32
    scf.if %2 {
      %cst = arith.constant 0.000000e+00 : f32
      %8 = vector.broadcast %cst : f32 to vector<1x128xf32>
      %c0 = arith.constant 0 : index
      %c0_3 = arith.constant 0 : index
      %9 = vector.load %arg5[%c0, %c0_3] : memref<1x128xf32, #tpu.memory_space<vmem>>, vector<1x128xf32>
      tpu.vector_store %arg5[%c0, %c0_3], %8 {strides = array<i32>} : memref<1x128xf32, #tpu.memory_space<vmem>>, vector<1x128xf32>,
    } else {
    }
    %c1_i32 = arith.constant 1 : i32
    %3 = arith.muli %arg0, %c1_i32 : i32
    %4 = arith.addi %3, %arg1 : i32
    %c1_i32_1 = arith.constant 1 : i32
    %5 = arith.cmpi slt, %4, %c1_i32_1 : i32
    %6 = arith.extui %5 : i1 to i32
    %c0_i32_2 = arith.constant 0 : i32
    %7 = arith.cmpi ne, %6, %c0_i32_2 : i32
    scf.if %7 {
      %c0 = arith.constant 0 : index
      %c0_3 = arith.constant 0 : index
      %8 = vector.load %arg3[%c0, %c0_3] : memref<16x128xf32, #tpu.memory_space<vmem>>, vector<16x128xf32>
      %c0_4 = arith.constant 0 : index
      %c0_5 = arith.constant 0 : index
      %9 = vector.load %arg4[%c0_4, %c0_5] : memref<16x128xf32, #tpu.memory_space<vmem>>, vector<16x128xf32>
      %c0_6 = arith.constant 0 : index
      %10 = memref.load %arg2[%c0_6] : memref<1xf32, #tpu.memory_space<smem>>
      %11 = math.absf %8 : vector<16x128xf32>
      %cst = arith.constant 0.000000e+00 : f32
      %12 = vector.broadcast %cst : f32 to vector<16x128xf32>
      %13 = arith.subf %12, %11 : vector<16x128xf32>
      %14 = math.exp %13 : vector<16x128xf32>
      %cst_7 = arith.constant 1.000000e+00 : f32
      %15 = vector.broadcast %cst_7 : f32 to vector<16x128xf32>
      %16 = arith.addf %15, %14 : vector<16x128xf32>
      %17 = math.log %16 : vector<16x128xf32>
      %cst_8 = arith.constant 0.000000e+00 : f32
      %18 = vector.broadcast %cst_8 : f32 to vector<16x128xf32>
      %19 = arith.subf %18, %8 : vector<16x128xf32>
      %cst_9 = arith.constant 0.000000e+00 : f32
      %20 = vector.broadcast %cst_9 : f32 to vector<16x128xf32>
      %21 = arith.maximumf %19, %20 : vector<16x128xf32>
      %22 = arith.addf %21, %17 : vector<16x128xf32>
      %cst_10 = arith.constant 0.000000e+00 : f32
      %23 = vector.broadcast %cst_10 : f32 to vector<16x128xf32>
      %24 = arith.maximumf %8, %23 : vector<16x128xf32>
      %25 = arith.addf %24, %17 : vector<16x128xf32>
      %26 = vector.broadcast %10 : f32 to vector<16x128xf32>
      %27 = arith.mulf %26, %9 : vector<16x128xf32>
      %28 = arith.mulf %27, %22 : vector<16x128xf32>
      %cst_11 = arith.constant 1.000000e+00 : f32
      %29 = vector.broadcast %cst_11 : f32 to vector<16x128xf32>
      %30 = arith.subf %29, %9 : vector<16x128xf32>
      %31 = arith.mulf %30, %25 : vector<16x128xf32>
      %32 = arith.addf %28, %31 : vector<16x128xf32>
      %c0_12 = arith.constant 0 : index
      %c0_13 = arith.constant 0 : index
      %33 = vector.load %arg5[%c0_12, %c0_13] : memref<1x128xf32, #tpu.memory_space<vmem>>, vector<1x128xf32>
      %cst_14 = arith.constant dense<0.000000e+00> : vector<128xf32>
      %34 = vector.multi_reduction <add>, %32, %cst_14 [0] : vector<16x128xf32> to vector<128xf32>
      %35 = vector.shape_cast %34 : vector<128xf32> to vector<1x128xf32>
      %36 = arith.addf %33, %35 : vector<1x128xf32>
      %c0_15 = arith.constant 0 : index
      %c0_16 = arith.constant 0 : index
      %37 = vector.load %arg5[%c0_15, %c0_16] : memref<1x128xf32, #tpu.memory_space<vmem>>, vector<1x128xf32>
      tpu.vector_store %arg5[%c0_15, %c0_16], %36 {strides = array<i32>} : memref<1x128xf32, #tpu.memory_space<vmem>>, vector<1x128xf32>,
    } else {
    }
    return
  }
  func.func @transform_0(%arg0: i32, %arg1: i32) -> i32 {
    %c0_i32 = arith.constant 0 : i32
    %c0_i32_0 = arith.constant 0 : i32
    return %c0_i32 : i32
  }
  func.func @transform_1(%arg0: i32, %arg1: i32) -> (i32, i32) {
    %c1_i32 = arith.constant 1 : i32
    %0 = arith.muli %arg0, %c1_i32 : i32
    %1 = arith.addi %0, %arg1 : i32
    %c0_i32 = arith.constant 0 : i32
    %2 = arith.minsi %1, %c0_i32 : i32
    %c0_i32_0 = arith.constant 0 : i32
    %c0_i32_1 = arith.constant 0 : i32
    return %2, %c0_i32_0 : i32, i32
  }
  func.func @transform_2(%arg0: i32, %arg1: i32) -> (i32, i32) {
    %c1_i32 = arith.constant 1 : i32
    %0 = arith.muli %arg0, %c1_i32 : i32
    %1 = arith.addi %0, %arg1 : i32
    %c0_i32 = arith.constant 0 : i32
    %2 = arith.minsi %1, %c0_i32 : i32
    %c0_i32_0 = arith.constant 0 : i32
    %c0_i32_1 = arith.constant 0 : i32
    return %2, %c0_i32_0 : i32, i32
  }
  func.func @transform_3(%arg0: i32, %arg1: i32) -> (i32, i32) {
    %c0_i32 = arith.constant 0 : i32
    %c0_i32_0 = arith.constant 0 : i32
    return %arg0, %c0_i32 : i32, i32
  }
}

</mosaic_0001>

<llo_original>
// kernel: tpu_custom_call.1
$region0: #{tpu_custom_call.1}
  #allocation0 [shape = 'u32[]', space=smem, size = 0x4, offset = 0x4, fixed_abs, tag = 'smem constant byte address 0x4 - core index']
  #allocation1 [shape = 'u32[72,128]{1,0:T(1,128)}', space=vmem, size = 0x9000, scoped, tag = 'internal scratch']
  #allocation2 [shape = 'f32[1]{0:T(128)S(6)}', space=smem, size = 0x200, scoped, tag = 'scoped memory for tpu_custom_call.1']
  %s0 = inlined_call_operand.<no memory space> [shape: f32[1], index: 0, kind: input, shape index: {}]
  %s1 = inlined_call_operand.hbm [shape: f32[16,128], index: 1, kind: input, shape index: {}]
  %s2 = inlined_call_operand.hbm [shape: f32[16,128], index: 2, kind: input, shape index: {}]
  %s3 = inlined_call_operand.hbm [shape: f32[1,128], index: 3, kind: output, shape index: {}]
  %s4 = sld [smem:[#allocation0]]
  $region38: #{tpu_custom_call.1} parent=0
    _
  %s6 = ssub.s32 1, %s4
  %s7 = scalar_select 0, %s6, %s4
  %8 = sst [smem:[#allocation2]] %s0
  $region1: #{tpu_custom_call.1} parent=0
    #allocation3 [shape = 'u8[8192]{0}', space=vmem, size = 0x2000, scoped, tag = 'input window, operand 1, single buffered']
    #allocation4 [shape = 's32[1]{0}', space=sflag, size = 0x4, scoped, tag = 'scoped memory for tpu_custom_call.1']
    #allocation5 [shape = 's32[1]{0}', space=sflag, size = 0x4, scoped, tag = 'scoped memory for tpu_custom_call.1']
    #allocation6 [shape = 'u8[8192]{0}', space=vmem, size = 0x2000, scoped, tag = 'input window, operand 2, single buffered']
    #allocation7 [shape = 's32[1]{0}', space=sflag, size = 0x4, scoped, tag = 'scoped memory for tpu_custom_call.1']
    #allocation8 [shape = 'u8[512]{0}', space=vmem, size = 0x400, scoped, tag = 'output window, operand 0, single buffered']
    %9 = vsyncpa [#allocation4], 0
    %10 = vsyncpa [#allocation7], 0
    %11 = vsyncpa [#allocation5], 0
    // Predicated region
    $region2: #{tpu_custom_call.1} parent=1 // pred_check
      _
    $region3: #{tpu_custom_call.1} parent=1 // pred_check_branch
      %13 = sbr.rel (0) target = $region5
    $region4: #{tpu_custom_call.1} parent=1 // pred_region
      _
    $region5: #{tpu_custom_call.1} parent=1 // pred_fallthru
      _
    // Predicated region
    $region6: #{tpu_custom_call.1} parent=1 // pred_check
      _
    $region7: #{tpu_custom_call.1} parent=1 // pred_check_branch
      %15 = sbr.rel (0) target = $region9
    $region8: #{tpu_custom_call.1} parent=1 // pred_region
      %s16 = sadd.s32 0, 0
      %p17 = scmp.lt.s32.totalorder %s16, 0
      %s18 = scalar_select %p17, %s16, 0
      %s19 = smul.u32 2, %s18
      %21 = vsyncadd [#allocation4], 0
      %s22 = smul.addr %s19, 8
      %s23 = scalar_lea.hbm %s1, %s22
      %s24 = sshll.u32 %s23, 4
      %s25 = int_to_ptr.hbm [resolvable:$true] %s24
      %s26 = sshll.u32 [#allocation3], 4
      %s27 = int_to_ptr.vmem [resolvable:$true] %s26
      %32 = dma.hbm_to_vmem [thread:$0]  %s25, 256, %s27, [#allocation4], 128, 128, 8
    $region9: #{tpu_custom_call.1} parent=1 // pred_fallthru
      _
    // Predicated region
    $region10: #{tpu_custom_call.1} parent=1 // pred_check
      _
    $region11: #{tpu_custom_call.1} parent=1 // pred_check_branch
      %34 = sbr.rel (0) target = $region13
    $region12: #{tpu_custom_call.1} parent=1 // pred_region
      %s35 = sadd.s32 0, 0
      %p36 = scmp.lt.s32.totalorder %s35, 0
      %s37 = scalar_select %p36, %s35, 0
      %s38 = smul.u32 2, %s37
      %40 = vsyncadd [#allocation7], 0
      %s41 = smul.addr %s38, 8
      %s42 = scalar_lea.hbm %s2, %s41
      %s43 = sshll.u32 %s42, 4
      %s44 = int_to_ptr.hbm [resolvable:$true] %s43
      %s45 = sshll.u32 [#allocation6], 4
      %s46 = int_to_ptr.vmem [resolvable:$true] %s45
      %51 = dma.hbm_to_vmem [thread:$0]  %s44, 256, %s46, [#allocation7], 128, 128, 8
    $region13: #{tpu_custom_call.1} parent=1 // pred_fallthru
      _
    // Predicated region
    $region14: #{tpu_custom_call.1} parent=1 // pred_check
      _
    $region15: #{tpu_custom_call.1} parent=1 // pred_check_branch
      %53 = sbr.rel (0) target = $region17
    $region16: #{tpu_custom_call.1} parent=1 // pred_region
      %55 = dma.done [#allocation4], 256
    $region17: #{tpu_custom_call.1} parent=1 // pred_fallthru
      _
    // Predicated region
    $region18: #{tpu_custom_call.1} parent=1 // pred_check
      _
    $region19: #{tpu_custom_call.1} parent=1 // pred_check_branch
      %57 = sbr.rel (0) target = $region21
    $region20: #{tpu_custom_call.1} parent=1 // pred_region
      %59 = dma.done [#allocation7], 256
    $region21: #{tpu_custom_call.1} parent=1 // pred_fallthru
      _
    %s60 = sadd.s32 0, 0
    %p61 = scmp.lt.s32.totalorder %s60, 0
    %s62 = scalar_select %p61, %s60, 0
    %s63 = smul.u32 2, %s62
    %s64 = sadd.s32 0, 0
    %p65 = scmp.lt.s32.totalorder %s64, 0
    %s66 = scalar_select %p65, %s64, 0
    %s67 = smul.u32 2, %s66
    %p68 = scmp.eq.s32.totalorder 0, 0
    // Predicated region
    $region22: #{tpu_custom_call.1} parent=1 // pred_check
      %p69 = pneg %p68
    $region23: #{tpu_custom_call.1} parent=1 // pred_check_branch
      %71 = sbr.rel (%p69) target = $region25
    $region24: #{tpu_custom_call.1} parent=1 // pred_region
      %72 = vst [vmem:[#allocation8] sm:$0x1] 0.0
    $region25: #{tpu_custom_call.1} parent=1 // pred_fallthru
      _
    %s73 = sadd.s32 0, 0
    %p74 = scmp.lt.s32.totalorder %s73, 1
    // Predicated region
    $region26: #{tpu_custom_call.1} parent=1 // pred_check
      %p75 = pneg %p74
    $region27: #{tpu_custom_call.1} parent=1 // pred_check_branch
      %77 = sbr.rel (%p75) target = $region29
    $region28: #{tpu_custom_call.1} parent=1 // pred_region
      %v78 = vld [vmem:[#allocation3] sm:$0xff]
      %v79 = vld [vmem:[#allocation3 + $0x8] sm:$0xff]
      %v80 = vld [vmem:[#allocation6] sm:$0xff]
      %v81 = vld [vmem:[#allocation6 + $0x8] sm:$0xff]
      %s82 = sld [smem:[#allocation2]]
      %v83 = vand.u32 2147483647, %v78
      %v84 = vand.u32 2147483647, %v79
      %v85 = vsub.f32 0.0, %v83
      %v86 = vsub.f32 0.0, %v84
      %v87 = vmul.f32 %v85, 1.442695
      %v88 = vpow.pop %v87
      %v89 = vmul.f32 %v86, 1.442695
      %v90 = vpow.pop %v89
      %v91 = vadd.f32 %v88, 1.0
      %v92 = vadd.f32 %v90, 1.0
      %v93 = vlog2.pop %v91
      %v94 = vmul.f32 %v93, 0.6931472
      %v95 = vlog2.pop %v92
      %v96 = vmul.f32 %v95, 0.6931472
      %v97 = vsub.f32 0.0, %v78
      %v98 = vsub.f32 0.0, %v79
      %v99 = vmax.f32 %v97, 0.0
      %v100 = vmax.f32 %v98, 0.0
      %v101 = vadd.f32 %v99, %v94
      %v102 = vadd.f32 %v100, %v96
      %v103 = vmax.f32 %v78, 0.0
      %v104 = vmax.f32 %v79, 0.0
      %v105 = vadd.f32 %v103, %v94
      %v106 = vadd.f32 %v104, %v96
      %v107 = vstv %s82
      %v108 = vmul.f32 %v107, %v80
      %v109 = vmul.f32 %v107, %v81
      %v110 = vmul.f32 %v108, %v101
      %v111 = vmul.f32 %v109, %v102
      %v112 = vsub.f32 1.0, %v80
      %v113 = vsub.f32 1.0, %v81
      %v114 = vmul.f32 %v112, %v105
      %v115 = vmul.f32 %v113, %v106
      %v116 = vadd.f32 %v110, %v114
      %v117 = vadd.f32 %v111, %v115
      %v118 = vld [vmem:[#allocation8] sm:$0x1]
      %v119 = vadd.f32 %v116, %v117
      %v120 = vrot.slane %v119, 4
      %v121 = vadd.f32 %v119, %v120
      %v122 = vrot.slane %v121, 2
      %v123 = vadd.f32 %v121, %v122
      %v124 = vrot.slane %v123, 1
      %v125 = vadd.f32 %v123, %v124
      %v126 = vadd.f32 %v118, %v125
      %127 = vst [vmem:[#allocation8] sm:$0x1] %v126
    $region29: #{tpu_custom_call.1} parent=1 // pred_fallthru
      _
    // Predicated region
    $region30: #{tpu_custom_call.1} parent=1 // pred_check
      _
    $region31: #{tpu_custom_call.1} parent=1 // pred_check_branch
      %129 = sbr.rel (0) target = $region33
    $region32: #{tpu_custom_call.1} parent=1 // pred_region
      %131 = vsyncadd [#allocation5], 0
      %s133 = sshll.u32 [#allocation8], 4
      %s134 = int_to_ptr.vmem [resolvable:$true] %s133
      %s135 = sshll.u32 %s3, 4
      %s136 = int_to_ptr.hbm [resolvable:$true] %s135
      %138 = dma.vmem_to_hbm [thread:$0]  %s134, 16, %s136, [#allocation5]
    $region33: #{tpu_custom_call.1} parent=1 // pred_fallthru
      _
    // Predicated region
    $region34: #{tpu_custom_call.1} parent=1 // pred_check
      _
    $region35: #{tpu_custom_call.1} parent=1 // pred_check_branch
      %140 = sbr.rel (0) target = $region37
    $region36: #{tpu_custom_call.1} parent=1 // pred_region
      %142 = dma.done [#allocation5], 16
    $region37: #{tpu_custom_call.1} parent=1 // pred_fallthru
      _
    %143 = vsyncpa [#allocation4], 1
    %144 = vsyncpa [#allocation7], 1
    %145 = vsyncpa [#allocation5], 1

</llo_original>
